<compile_context>
chip_gen: v5e
topology: v5e:2x2
jax: 0.10.0
libtpu: 0.0.40
codegen_flags: <defaults>
</compile_context>

<pallas_src>
import jax
import jax.numpy as jnp
from jax.experimental import pallas as pl
from jax.experimental.pallas import tpu as pltpu


def _copy_kernel(x_ref, o_ref):
    # Pure tile copy VMEM->VMEM (placeholder for a real encoder body).
    o_ref[...] = x_ref[...]


def _lane_dense_width(n: int):
    """Largest multiple-of-128 lane width (power-of-two) that divides n."""
    for w in (32768, 16384, 8192, 4096, 2048, 1024, 512, 256, 128):
        if n % w == 0:
            return w
    return None


def _row_tile(rows: int, width: int, itemsize: int,
              target_bytes: int = 4 * 1024 * 1024) -> int:
    """Row-block size: ~4 MiB per block, multiple of 8 (unless rows < 8)."""
    row_bytes = max(1, width * itemsize)
    max_rows = max(8, (target_bytes // row_bytes) // 8 * 8)
    return min(rows, max_rows)


def _tiled_copy_2d(x2d: jax.Array) -> jax.Array:
    """Pipelined HBM->VMEM->HBM copy of a 2-D slab with ~4 MiB row blocks."""
    rows, width = x2d.shape
    itemsize = jnp.dtype(x2d.dtype).itemsize
    tr = _row_tile(rows, width, itemsize)
    grid = (pl.cdiv(rows, tr),)  # Pallas masks the partial last block.

    return pl.pallas_call(
        _copy_kernel,
        out_shape=jax.ShapeDtypeStruct((rows, width), x2d.dtype),
        grid=grid,
        in_specs=[pl.BlockSpec((tr, width), lambda r: (r, 0))],
        out_specs=pl.BlockSpec((tr, width), lambda r: (r, 0)),
        # NOTE: no input_output_aliases here -- this path is called eagerly
        # (input not donated), where aliasing only triggers a defensive copy.
        cost_estimate=pl.CostEstimate(
            flops=0,
            transcendentals=0,
            bytes_accessed=2 * rows * width * itemsize,
        ),
        compiler_params=pltpu.CompilerParams(
            dimension_semantics=("parallel",),
            vmem_limit_bytes=32 * 1024 * 1024,  # 4 bufs x 4 MiB << limit
        ),
    )(x2d)


def encoder_interface_copy(inputs: jax.Array) -> jax.Array:
    """Materialize a fresh copy of `inputs` with a Pallas tiled-copy kernel."""
    B, T, D = inputs.shape
    n = B * T * D
    width = _lane_dense_width(n)

    if width is not None:
        # Lane-dense layout plumbing (wrapper-side): full vst stores.
        rows = n // width
        out2d = _tiled_copy_2d(inputs.reshape(rows, width))
        return out2d.reshape(B, T, D)

    # Lane-sparse fallback (D and B*T*D not multiples of 128): keep D as the
    # full (un-tiled) lane dim and tile many rows per block so DMAs stay big.
    out2d = _tiled_copy_2d(inputs.reshape(B * T, D))
    return out2d.reshape(B, T, D)


def encoder_interface_forward(inputs: jax.Array, input_lengths: jax.Array,
                              materialize: bool = False):
    """Concrete realization of EncoderInterface.forward.

    The interface specifies no transformation, so the performance-optimal
    identity is to not move the data at all (materialize=False).  With
    materialize=True a Pallas tiled-copy kernel produces a fresh buffer.
    """
    if not materialize:
        # Zero HBM traffic: the dominant optimization for an identity op.
        return inputs, input_lengths
    outputs = encoder_interface_copy(inputs)
    # input_lengths passes through untouched (it only describes padding).
    return outputs, input_lengths


class EncoderInterface:
    """JAX/Pallas analogue of the PyTorch base interface."""

    def __init__(self):
        # The interface declares no parameters.
        self._params = {}
        self.dropout_p = None

    def count_parameters(self) -> int:
        return sum(int(p.size) for p in jax.tree_util.tree_leaves(self._params))

    def update_dropout(self, dropout_p: float) -> None:
        # No dropout submodules exist on the bare interface; nothing to update.
        self.dropout_p = dropout_p

    def forward(self, inputs: jax.Array, input_lengths: jax.Array,
                materialize: bool = False):
        return encoder_interface_forward(inputs, input_lengths, materialize)

    __call__ = forward


if __name__ == "__main__":
    key = jax.random.PRNGKey(0)
    batch, seq_length, dimension = 2, 8, 32

    k_in, _ = jax.random.split(key)
    inputs = jax.random.normal(
        k_in, (batch, seq_length, dimension), dtype=jnp.float32
    )
    input_lengths = jnp.array([8, 5], dtype=jnp.int32)

    enc = EncoderInterface()

    # Exercise the Pallas tiled-copy kernel once (materialized path).
    outputs, output_lengths = enc(inputs, input_lengths, materialize=True)
    jax.block_until_ready(outputs)
    jax.block_until_ready(output_lengths)

    # Interface contract checks: shapes/dtypes preserved, data untouched.
    assert outputs.shape == inputs.shape and outputs.dtype == inputs.dtype
    assert output_lengths.shape == input_lengths.shape
    assert bool(jnp.allclose(outputs, inputs))
    assert bool(jnp.array_equal(output_lengths, input_lengths))

    # Zero-copy default path (the performance-optimal identity).
    out2, len2 = enc(inputs, input_lengths)
    assert out2 is inputs and len2 is input_lengths
    assert enc.count_parameters() == 0

    print("KERNEL_OK")
</pallas_src>

<mosaic_0001>
module attributes {stable_mosaic.version = 11 : i64} {
  func.func @_copy_kernel(%arg0: i32, %arg1: memref<1x512xf32, #tpu.memory_space<vmem>>, %arg2: memref<1x512xf32, #tpu.memory_space<vmem>>) attributes {dimension_semantics = [#tpu.dimension_semantics<parallel>], iteration_bounds = array<i64: 1>, scalar_prefetch = 0 : i64, scratch_operands = 0 : i64, tpu.core_type = #tpu.core_type<tc>, window_params = [{transform_indices = @transform_0, window_bounds = array<i64: 1, 512>}, {transform_indices = @transform_1, window_bounds = array<i64: 1, 512>}]} {
    %c0 = arith.constant 0 : index
    %c0_0 = arith.constant 0 : index
    %0 = vector.load %arg1[%c0, %c0_0] : memref<1x512xf32, #tpu.memory_space<vmem>>, vector<1x512xf32>
    %c0_1 = arith.constant 0 : index
    %c0_2 = arith.constant 0 : index
    %1 = vector.load %arg2[%c0_1, %c0_2] : memref<1x512xf32, #tpu.memory_space<vmem>>, vector<1x512xf32>
    tpu.vector_store %arg2[%c0_1, %c0_2], %0 {strides = array<i32>} : memref<1x512xf32, #tpu.memory_space<vmem>>, vector<1x512xf32>,
    return
  }
  func.func @transform_0(%arg0: i32) -> (i32, i32) {
    %c0_i32 = arith.constant 0 : i32
    %c0_i32_0 = arith.constant 0 : i32
    return %arg0, %c0_i32 : i32, i32
  }
  func.func @transform_1(%arg0: i32) -> (i32, i32) {
    %c0_i32 = arith.constant 0 : i32
    %c0_i32_0 = arith.constant 0 : i32
    return %arg0, %c0_i32 : i32, i32
  }
}

</mosaic_0001>

<llo_original>
// kernel: tpu_custom_call.1
$region0: #{tpu_custom_call.1}
  #allocation0 [shape = 'u32[]', space=smem, size = 0x4, offset = 0x4, fixed_abs, tag = 'smem constant byte address 0x4 - core index']
  #allocation1 [shape = 'u32[72,128]{1,0:T(1,128)}', space=vmem, size = 0x9000, scoped, tag = 'internal scratch']
  %s0 = inlined_call_operand.hbm [shape: f32[1,512], index: 0, kind: input, shape index: {}]
  %s1 = inlined_call_operand.hbm [shape: f32[1,512], index: 1, kind: output, shape index: {}]
  %s2 = sld [smem:[#allocation0]]
  $region18: #{tpu_custom_call.1} parent=0
    _
  %s4 = ssub.s32 1, %s2
  %s5 = scalar_select 0, %s4, %s2
  $region1: #{tpu_custom_call.1} parent=0
    #allocation2 [shape = 'u8[2048]{0}', space=vmem, size = 0x800, scoped, tag = 'input window, operand 0, single buffered']
    #allocation3 [shape = 's32[1]{0}', space=sflag, size = 0x4, scoped, tag = 'scoped memory for tpu_custom_call.1']
    #allocation4 [shape = 's32[1]{0}', space=sflag, size = 0x4, scoped, tag = 'scoped memory for tpu_custom_call.1']
    #allocation5 [shape = 'u8[2048]{0}', space=vmem, size = 0x800, scoped, tag = 'output window, operand 0, single buffered']
    %6 = vsyncpa [#allocation3], 0
    %7 = vsyncpa [#allocation4], 0
    // Predicated region
    $region2: #{tpu_custom_call.1} parent=1 // pred_check
      _
    $region3: #{tpu_custom_call.1} parent=1 // pred_check_branch
      %9 = sbr.rel (0) target = $region5
    $region4: #{tpu_custom_call.1} parent=1 // pred_region
      %11 = vsyncadd [#allocation3], 0
      %s13 = sshll.u32 %s0, 4
      %s14 = int_to_ptr.hbm [resolvable:$true] %s13
      %s15 = sshll.u32 [#allocation2], 4
      %s16 = int_to_ptr.vmem [resolvable:$true] %s15
      %18 = dma.hbm_to_vmem [thread:$0]  %s14, 64, %s16, [#allocation3]
    $region5: #{tpu_custom_call.1} parent=1 // pred_fallthru
      _
    // Predicated region
    $region6: #{tpu_custom_call.1} parent=1 // pred_check
      _
    $region7: #{tpu_custom_call.1} parent=1 // pred_check_branch
      %20 = sbr.rel (0) target = $region9
    $region8: #{tpu_custom_call.1} parent=1 // pred_region
      %22 = dma.done [#allocation3], 64
    $region9: #{tpu_custom_call.1} parent=1 // pred_fallthru
      _
    %v23 = vld [vmem:[#allocation2] sm:$0xf]
    %v24 = vlaneseq
    %vm25 = vcmp.ge.s32.totalorder %v24, 0
    %vm26 = vcmp.lt.s32.totalorder %v24, 512
    %vm27 = vmand %vm25, %vm26
    %28 = vst.msk [vmem:[#allocation5] sm:$0xf] %vm27, %v23
    // Predicated region
    $region10: #{tpu_custom_call.1} parent=1 // pred_check
      _
    $region11: #{tpu_custom_call.1} parent=1 // pred_check_branch
      %30 = sbr.rel (0) target = $region13
    $region12: #{tpu_custom_call.1} parent=1 // pred_region
      %32 = vsyncadd [#allocation4], 0
      %s34 = sshll.u32 [#allocation5], 4
      %s35 = int_to_ptr.vmem [resolvable:$true] %s34
      %s36 = sshll.u32 %s1, 4
      %s37 = int_to_ptr.hbm [resolvable:$true] %s36
      %39 = dma.vmem_to_hbm [thread:$0]  %s35, 64, %s37, [#allocation4]
    $region13: #{tpu_custom_call.1} parent=1 // pred_fallthru
      _
    // Predicated region
    $region14: #{tpu_custom_call.1} parent=1 // pred_check
      _
    $region15: #{tpu_custom_call.1} parent=1 // pred_check_branch
      %41 = sbr.rel (0) target = $region17
    $region16: #{tpu_custom_call.1} parent=1 // pred_region
      %43 = dma.done [#allocation4], 64
    $region17: #{tpu_custom_call.1} parent=1 // pred_fallthru
      _
    %44 = vsyncpa [#allocation3], 1
    %45 = vsyncpa [#allocation4], 1

</llo_original>
